<compile_context>
chip_gen: v6e
topology: v6e:2x2x1
jax: 0.10.0
libtpu: 0.0.40
codegen_flags: <defaults>
</compile_context>

<pallas_src>
import functools

import jax
import jax.numpy as jnp
from jax.experimental import pallas as pl
from jax.experimental.pallas import tpu as pltpu


def _inner_product_decoder_kernel(a_ref, b_ref, o_ref, *, approx_recip):
    # a_ref: (tm, D) row block of x;  b_ref: (D, tn) column block via x.T.
    logits = jnp.dot(a_ref[...], b_ref[...], preferred_element_type=jnp.float32)
    if approx_recip:
        # sigmoid(z) = 1 / (1 + exp(-z)); exp on EUP, approximate reciprocal on EUP.
        o_ref[...] = pl.reciprocal(1.0 + jnp.exp(-logits), approx=True).astype(
            o_ref.dtype
        )
    else:
        o_ref[...] = jax.nn.sigmoid(logits).astype(o_ref.dtype)


def _round_up(v, m):
    return ((v + m - 1) // m) * m


def _pick_tile(n, cap, align):
    """Largest multiple of `align` that divides n and is <= cap (requires align | n)."""
    best = align
    t = align
    lim = min(cap, n)
    while t <= lim:
        if n % t == 0:
            best = t
        t += align
    return best


def reconstruction_forward(x, *, dropout=0.0, tm=None, tn=None, use_bf16=True,
                           approx_recip=True):
    """Pallas implementation of Reconstruction(InnerProductDecoder).forward.

    x: (N, in_dim) float array. Returns sigmoid(x @ x.T), shape (N, N).
    """
    # TODO(synk): dropout > 0.0 (training mode) not implemented; p=0.0 is identity.
    assert dropout == 0.0

    n, d = x.shape
    out_dtype = x.dtype

    # Pad N up to a multiple of 128 so output stores are lane-dense / unmasked and
    # both tile dims have 8/128-aligned divisors. Padded rows/cols are sliced off.
    n_pad = _round_up(n, 128)

    in_dtype = jnp.bfloat16 if use_bf16 else x.dtype
    xw = x.astype(in_dtype)                      # cast once, in the wrapper
    if n_pad != n:
        xw = jnp.pad(xw, ((0, n_pad - n), (0, 0)))
    xt = xw.T                                    # (D, n_pad): canonical (m,k)x(k,n) RHS

    # Lane-dense output tiles: tn multiple of 128 (<= 2048), tm multiple of 8
    # (<= 512), both dividing the padded N so stores are unmasked.
    if tn is None:
        tn = _pick_tile(n_pad, 2048, 128)
    if tm is None:
        tm = _pick_tile(n_pad, 512, 8)
    assert n_pad % tn == 0 and tn % 128 == 0
    assert n_pad % tm == 0 and tm % 8 == 0

    grid = (n_pad // tm, n_pad // tn)

    # VMEM budget from the actual double-buffered footprint (v7x: 64 MiB physical),
    # with generous headroom for internal scratch; never exceeds 48 MiB.
    in_itemsize = jnp.dtype(in_dtype).itemsize
    out_itemsize = jnp.dtype(out_dtype).itemsize
    a_buf = tm * _round_up(d, 128) * in_itemsize          # x row tile (lane-padded)
    b_buf = _round_up(d, 16) * tn * in_itemsize            # x.T col tile
    o_buf = tm * tn * out_itemsize                          # output tile
    vmem_limit = int(min(2 * (a_buf + b_buf + o_buf) + (8 << 20), 48 << 20))

    kernel = functools.partial(
        _inner_product_decoder_kernel, approx_recip=approx_recip
    )

    out = pl.pallas_call(
        kernel,
        out_shape=jax.ShapeDtypeStruct((n_pad, n_pad), out_dtype),
        grid_spec=pltpu.PrefetchScalarGridSpec(
            num_scalar_prefetch=0,
            grid=grid,
            in_specs=[
                pl.BlockSpec((tm, d), lambda i, j: (i, 0)),   # row block of x
                pl.BlockSpec((d, tn), lambda i, j: (0, j)),   # col block via x.T
            ],
            out_specs=pl.BlockSpec((tm, tn), lambda i, j: (i, j)),
        ),
        compiler_params=pltpu.CompilerParams(
            dimension_semantics=("parallel", "parallel"),
            vmem_limit_bytes=vmem_limit,
        ),
        cost_estimate=pl.CostEstimate(
            flops=2 * n_pad * n_pad * d,
            transcendentals=n_pad * n_pad,
            bytes_accessed=(n_pad * n_pad * out_itemsize
                            + 2 * n_pad * d * in_itemsize),
        ),
    )(xw, xt)

    if n_pad != n:
        out = out[:n, :n]
    return out


def reconstruction_reference(x):
    # Pure-JAX / f32 reference for the same forward pass.
    return jax.nn.sigmoid(x @ x.T)


if __name__ == "__main__":
    key = jax.random.PRNGKey(0)

    # N nodes, in_dim embedding size (Reconstruction(in_dim=32)).
    # N = 200 is deliberately not a multiple of 128 to exercise the padding path.
    N, in_dim = 200, 32
    x = jax.random.normal(key, (N, in_dim), dtype=jnp.float32)

    out = jax.block_until_ready(reconstruction_forward(x))

    ref = reconstruction_reference(x)
    assert out.shape == (N, N)
    # bf16 MXU inputs with f32 accumulation + approximate reciprocal; sigmoid output
    # lies in (0, 1), so an absolute tolerance of 2e-2 comfortably bounds the error.
    max_err = float(jnp.max(jnp.abs(out - ref)))
    assert jnp.allclose(out, ref, atol=2e-2, rtol=0.0), max_err

    print("KERNEL_OK")
</pallas_src>

<mosaic_0001>
module attributes {stable_mosaic.version = 11 : i64} {
  func.func @_inner_product_decoder_kernel(%arg0: i32, %arg1: i32, %arg2: memref<256x32xbf16, #tpu.memory_space<vmem>>, %arg3: memref<32x256xbf16, #tpu.memory_space<vmem>>, %arg4: memref<256x256xf32, #tpu.memory_space<vmem>>) attributes {dimension_semantics = [#tpu.dimension_semantics<parallel>, #tpu.dimension_semantics<parallel>], iteration_bounds = array<i64: 1, 1>, scalar_prefetch = 0 : i64, scratch_operands = 0 : i64, tpu.core_type = #tpu.core_type<tc>, window_params = [{transform_indices = @transform_0, window_bounds = array<i64: 256, 32>}, {transform_indices = @transform_1, window_bounds = array<i64: 32, 256>}, {transform_indices = @transform_2, window_bounds = array<i64: 256, 256>}]} {
    %c0 = arith.constant 0 : index
    %c0_0 = arith.constant 0 : index
    %0 = vector.load %arg2[%c0, %c0_0] : memref<256x32xbf16, #tpu.memory_space<vmem>>, vector<256x32xbf16>
    %c0_1 = arith.constant 0 : index
    %c0_2 = arith.constant 0 : index
    %1 = vector.load %arg3[%c0_1, %c0_2] : memref<32x256xbf16, #tpu.memory_space<vmem>>, vector<32x256xbf16>
    %cst = arith.constant dense<0.000000e+00> : vector<256x256xf32>
    %2 = tpu.matmul %0, %1, %cst {dimension_numbers = #tpu.dot_dimension_numbers<[1], [0], [0], [1], [0, 0, 1, 1], [], []>} : vector<256x32xbf16>, vector<32x256xbf16>, vector<256x256xf32> -> vector<256x256xf32>
    %cst_3 = arith.constant 0.000000e+00 : f32
    %3 = vector.broadcast %cst_3 : f32 to vector<256x256xf32>
    %4 = arith.subf %3, %2 : vector<256x256xf32>
    %5 = math.exp %4 : vector<256x256xf32>
    %cst_4 = arith.constant 1.000000e+00 : f32
    %6 = vector.broadcast %cst_4 : f32 to vector<256x256xf32>
    %7 = arith.addf %6, %5 : vector<256x256xf32>
    %8 = tpu.reciprocal %7 {approx = true} : vector<256x256xf32> -> vector<256x256xf32>
    %c0_5 = arith.constant 0 : index
    %c0_6 = arith.constant 0 : index
    %9 = vector.load %arg4[%c0_5, %c0_6] : memref<256x256xf32, #tpu.memory_space<vmem>>, vector<256x256xf32>
    tpu.vector_store %arg4[%c0_5, %c0_6], %8 {strides = array<i32>} : memref<256x256xf32, #tpu.memory_space<vmem>>, vector<256x256xf32>,
    return
  }
  func.func @transform_0(%arg0: i32, %arg1: i32) -> (i32, i32) {
    %c0_i32 = arith.constant 0 : i32
    %c0_i32_0 = arith.constant 0 : i32
    return %arg0, %c0_i32 : i32, i32
  }
  func.func @transform_1(%arg0: i32, %arg1: i32) -> (i32, i32) {
    %c0_i32 = arith.constant 0 : i32
    %c0_i32_0 = arith.constant 0 : i32
    return %c0_i32, %arg1 : i32, i32
  }
  func.func @transform_2(%arg0: i32, %arg1: i32) -> (i32, i32) {
    %c0_i32 = arith.constant 0 : i32
    return %arg0, %arg1 : i32, i32
  }
}

</mosaic_0001>

<llo_original>
// kernel: tpu_custom_call.1
$region0: #{tpu_custom_call.1}
  #allocation0 [shape = 'u32[]', space=smem, size = 0x4, offset = 0x4, fixed_abs, tag = 'smem constant byte address 0x4 - core index']
  #allocation1 [shape = 'u32[144,128]{1,0:T(1,128)}', space=vmem, size = 0x12000, scoped, tag = 'internal scratch']
  %s0 = inlined_call_operand.vmem [shape: bf16[256,32], index: 0, kind: input, shape index: {}]
  %s1 = inlined_call_operand.vmem [shape: bf16[32,256], index: 1, kind: input, shape index: {}]
  %s2 = inlined_call_operand.hbm [shape: f32[256,256], index: 2, kind: output, shape index: {}]
  %s3 = sld [smem:[#allocation0]]
  $region18: #{tpu_custom_call.1} parent=0
    _
  %s5 = ssub.s32 1, %s3
  %s6 = scalar_select 0, %s5, %s3
  $region1: #{tpu_custom_call.1} parent=0
    #allocation2 [shape = 'u8[262144]{0}', space=vmem, size = 0x40000, scoped, tag = 'output window, operand 0, single buffered']
    #allocation3 [shape = 's32[1]{0}', space=sflag, size = 0x4, scoped, tag = 'scoped memory for tpu_custom_call.1']
    %7 = vsyncpa [#allocation3], 0
    // Predicated region
    $region2: #{tpu_custom_call.1} parent=1 // pred_check
      _
    $region3: #{tpu_custom_call.1} parent=1 // pred_check_branch
      %9 = sbr.rel (0) target = $region5
    $region4: #{tpu_custom_call.1} parent=1 // pred_region
      _
    $region5: #{tpu_custom_call.1} parent=1 // pred_fallthru
      _
    // Predicated region
    $region6: #{tpu_custom_call.1} parent=1 // pred_check
      _
    $region7: #{tpu_custom_call.1} parent=1 // pred_check_branch
      %11 = sbr.rel (0) target = $region9
    $region8: #{tpu_custom_call.1} parent=1 // pred_region
      _
    $region9: #{tpu_custom_call.1} parent=1 // pred_fallthru
      _
    %v13 = vld [vmem:[%s0] sm:$0xf]
    %v14 = vld [vmem:[%s0 + $0x4] sm:$0xf]
    %v15 = vld [vmem:[%s0 + $0x8] sm:$0xf]
    %v16 = vld [vmem:[%s0 + $0xc] sm:$0xf]
    %v17 = vld [vmem:[%s0 + $0x10] sm:$0xf]
    %v18 = vld [vmem:[%s0 + $0x14] sm:$0xf]
    %v19 = vld [vmem:[%s0 + $0x18] sm:$0xf]
    %v20 = vld [vmem:[%s0 + $0x1c] sm:$0xf]
    %v21 = vld [vmem:[%s0 + $0x20] sm:$0xf]
    %v22 = vld [vmem:[%s0 + $0x24] sm:$0xf]
    %v23 = vld [vmem:[%s0 + $0x28] sm:$0xf]
    %v24 = vld [vmem:[%s0 + $0x2c] sm:$0xf]
    %v25 = vld [vmem:[%s0 + $0x30] sm:$0xf]
    %v26 = vld [vmem:[%s0 + $0x34] sm:$0xf]
    %v27 = vld [vmem:[%s0 + $0x38] sm:$0xf]
    %v28 = vld [vmem:[%s0 + $0x3c] sm:$0xf]
    %v29 = vld [vmem:[%s0 + $0x40] sm:$0xf]
    %v30 = vld [vmem:[%s0 + $0x44] sm:$0xf]
    %v31 = vld [vmem:[%s0 + $0x48] sm:$0xf]
    %v32 = vld [vmem:[%s0 + $0x4c] sm:$0xf]
    %v33 = vld [vmem:[%s0 + $0x50] sm:$0xf]
    %v34 = vld [vmem:[%s0 + $0x54] sm:$0xf]
    %v35 = vld [vmem:[%s0 + $0x58] sm:$0xf]
    %v36 = vld [vmem:[%s0 + $0x5c] sm:$0xf]
    %v37 = vld [vmem:[%s0 + $0x60] sm:$0xf]
    %v38 = vld [vmem:[%s0 + $0x64] sm:$0xf]
    %v39 = vld [vmem:[%s0 + $0x68] sm:$0xf]
    %v40 = vld [vmem:[%s0 + $0x6c] sm:$0xf]
    %v41 = vld [vmem:[%s0 + $0x70] sm:$0xf]
    %v42 = vld [vmem:[%s0 + $0x74] sm:$0xf]
    %v43 = vld [vmem:[%s0 + $0x78] sm:$0xf]
    %v44 = vld [vmem:[%s0 + $0x7c] sm:$0xf]
    %v45 = vld [vmem:[%s1] sm:$0xff]
    %v46 = vld [vmem:[%s1 + $0x8] sm:$0xff]
    %v47 = vld [vmem:[%s1 + $0x10] sm:$0xff]
    %v48 = vld [vmem:[%s1 + $0x18] sm:$0xff]
    %v81 = vunpack.c.l.b16 %v13
    %v82 = vunpack.c.l.b16 %v14
    %v83 = vunpack.c.l.b16 %v15
    %v84 = vunpack.c.l.b16 %v16
    %v85 = vunpack.c.l.b16 %v17
    %v86 = vunpack.c.l.b16 %v18
    %v87 = vunpack.c.l.b16 %v19
    %v88 = vunpack.c.l.b16 %v20
    %v89 = vunpack.c.l.b16 %v21
    %v90 = vunpack.c.l.b16 %v22
    %v91 = vunpack.c.l.b16 %v23
    %v92 = vunpack.c.l.b16 %v24
    %v93 = vunpack.c.l.b16 %v25
    %v94 = vunpack.c.l.b16 %v26
    %v95 = vunpack.c.l.b16 %v27
    %v96 = vunpack.c.l.b16 %v28
    %v97 = vunpack.c.l.b16 %v29
    %v98 = vunpack.c.l.b16 %v30
    %v99 = vunpack.c.l.b16 %v31
    %v100 = vunpack.c.l.b16 %v32
    %v101 = vunpack.c.l.b16 %v33
    %v102 = vunpack.c.l.b16 %v34
    %v103 = vunpack.c.l.b16 %v35
    %v104 = vunpack.c.l.b16 %v36
    %v105 = vunpack.c.l.b16 %v37
    %v106 = vunpack.c.l.b16 %v38
    %v107 = vunpack.c.l.b16 %v39
    %v108 = vunpack.c.l.b16 %v40
    %v109 = vunpack.c.l.b16 %v41
    %v110 = vunpack.c.l.b16 %v42
    %v111 = vunpack.c.l.b16 %v43
    %v112 = vunpack.c.l.b16 %v44
    %v113 = vpack.c.b16 %v82, %v81
    %v114 = vpack.c.b16 %v84, %v83
    %v115 = vpack.c.b16 %v86, %v85
    %v116 = vpack.c.b16 %v88, %v87
    %v117 = vpack.c.b16 %v90, %v89
    %v118 = vpack.c.b16 %v92, %v91
    %v119 = vpack.c.b16 %v94, %v93
    %v120 = vpack.c.b16 %v96, %v95
    %v121 = vpack.c.b16 %v98, %v97
    %v122 = vpack.c.b16 %v100, %v99
    %v123 = vpack.c.b16 %v102, %v101
    %v124 = vpack.c.b16 %v104, %v103
    %v125 = vpack.c.b16 %v106, %v105
    %v126 = vpack.c.b16 %v108, %v107
    %v127 = vpack.c.b16 %v110, %v109
    %v128 = vpack.c.b16 %v112, %v111
    %v133 = vunpack.c.l.b16 %v45
    %v134 = vunpack.c.h.b16 %v45
    %v135 = vunpack.c.l.b16 %v46
    %v136 = vunpack.c.h.b16 %v46
    %v137 = vunpack.c.l.b16 %v47
    %v138 = vunpack.c.h.b16 %v47
    %v139 = vunpack.c.l.b16 %v48
    %v140 = vunpack.c.h.b16 %v48
    %v141 = vpack.c.b16 %v135, %v133
    %v142 = vpack.c.b16 %v136, %v134
    %v143 = vpack.c.b16 %v139, %v137
    %v144 = vpack.c.b16 %v140, %v138
    %vm149 = vcmask 261120
    %v151 = vsel %vm149, %v113, 0
    %v154 = vsel %vm149, %v114, 0
    %v157 = vsel %vm149, %v115, 0
    %v160 = vsel %vm149, %v116, 0
    %v163 = vsel %vm149, %v117, 0
    %v166 = vsel %vm149, %v118, 0
    %v169 = vsel %vm149, %v119, 0
    %v172 = vsel %vm149, %v120, 0
    %v175 = vsel %vm149, %v121, 0
    %v178 = vsel %vm149, %v122, 0
    %v181 = vsel %vm149, %v123, 0
    %v184 = vsel %vm149, %v124, 0
    %v187 = vsel %vm149, %v125, 0
    %v190 = vsel %vm149, %v126, 0
    %v193 = vsel %vm149, %v127, 0
    %v196 = vsel %vm149, %v128, 0
    %198 = vmatprep.subr.bf16.mxu0 0
    %199 = vmatpush1.bf16.msra.mxu0 0
    %200 = vmatprep.subr.bf16.mxu0 0
    %201 = vmatpush1.bf16.msra.mxu0 0
    %202 = vmatprep.subr.bf16.mxu0 0
    %203 = vmatpush1.bf16.msra.mxu0 0
    %204 = vmatprep.subr.bf16.mxu0 0
    %205 = vmatpush1.bf16.msra.mxu0 0
    %206 = vmatprep.subr.bf16.mxu0 0
    %207 = vmatpush1.bf16.msra.mxu0 0
    %208 = vmatprep.subr.bf16.mxu0 0
    %209 = vmatpush1.bf16.msra.mxu0 0
    %210 = vmatprep.subr.bf16.mxu0 %v144
    %211 = vmatpush1.bf16.msra.mxu0 %v143
    %212 = vmatprep.subr.bf16.mxu0 %v142
    %213 = vmatpush1.bf16.msra.mxu0 %v141
    %214 = vmatprep.subr.bf16.mxu0 0
    %215 = vmatpush2.bf16.msra.mxu0 0
    %216 = vmatprep.subr.bf16.mxu0 0
    %217 = vmatpush2.bf16.msra.mxu0 0
    %218 = vmatprep.subr.bf16.mxu0 0
    %219 = vmatpush2.bf16.msra.mxu0 0
    %220 = vmatprep.subr.bf16.mxu0 0
    %221 = vmatpush2.bf16.msra.mxu0 0
    %222 = vmatprep.subr.bf16.mxu0 0
    %223 = vmatpush2.bf16.msra.mxu0 0
    %224 = vmatprep.subr.bf16.mxu0 0
    %225 = vmatpush2.bf16.msra.mxu0 0
    %226 = vmatprep.subr.bf16.mxu0 0
    %227 = vmatpush2.bf16.msra.mxu0 0
    %228 = vmatprep.subr.bf16.mxu0 0
    %229 = vmatpush2.bf16.msra.mxu0 0
    %230 = vmatprep.mubr.bf16.mxu0 0
    %231 = vmatmul.mubr.bf16.gmra.mxu0 %v151
    %v232 = vpop.f32.mrf.mxu0
    %v233 = vadd.f32 0.0, %v232
    %v234 = vpop.f32.mrf.mxu0
    %v235 = vadd.f32 0.0, %v234
    %v236 = vpop.f32.mrf.mxu0
    %v237 = vadd.f32 0.0, %v236
    %v238 = vpop.f32.mrf.mxu0
    %v239 = vadd.f32 0.0, %v238
    %240 = vmatprep.mubr.bf16.mxu0 0
    %241 = vmatmul.mubr.bf16.gmra.mxu0 %v154
    %v242 = vpop.f32.mrf.mxu0
    %v243 = vadd.f32 0.0, %v242
    %v244 = vpop.f32.mrf.mxu0
    %v245 = vadd.f32 0.0, %v244
    %v246 = vpop.f32.mrf.mxu0
    %v247 = vadd.f32 0.0, %v246
    %v248 = vpop.f32.mrf.mxu0
    %v249 = vadd.f32 0.0, %v248
    %250 = vmatprep.mubr.bf16.mxu0 0
    %251 = vmatmul.mubr.bf16.gmra.mxu0 %v157
    %v252 = vpop.f32.mrf.mxu0
    %v253 = vadd.f32 0.0, %v252
    %v254 = vpop.f32.mrf.mxu0
    %v255 = vadd.f32 0.0, %v254
    %v256 = vpop.f32.mrf.mxu0
    %v257 = vadd.f32 0.0, %v256
    %v258 = vpop.f32.mrf.mxu0
    %v259 = vadd.f32 0.0, %v258
    %260 = vmatprep.mubr.bf16.mxu0 0
    %261 = vmatmul.mubr.bf16.gmra.mxu0 %v160
    %v262 = vpop.f32.mrf.mxu0
    %v263 = vadd.f32 0.0, %v262
    %v264 = vpop.f32.mrf.mxu0
    %v265 = vadd.f32 0.0, %v264
    %v266 = vpop.f32.mrf.mxu0
    %v267 = vadd.f32 0.0, %v266
    %v268 = vpop.f32.mrf.mxu0
    %v269 = vadd.f32 0.0, %v268
    %270 = vmatprep.mubr.bf16.mxu0 0
    %271 = vmatmul.mubr.bf16.gmra.mxu0 %v163
    %v272 = vpop.f32.mrf.mxu0
    %v273 = vadd.f32 0.0, %v272
    %v274 = vpop.f32.mrf.mxu0
    %v275 = vadd.f32 0.0, %v274
    %v276 = vpop.f32.mrf.mxu0
    %v277 = vadd.f32 0.0, %v276
    %v278 = vpop.f32.mrf.mxu0
    %v279 = vadd.f32 0.0, %v278
    %280 = vmatprep.mubr.bf16.mxu0 0
    %281 = vmatmul.mubr.bf16.gmra.mxu0 %v166
    %v282 = vpop.f32.mrf.mxu0
    %v283 = vadd.f32 0.0, %v282
    %v284 = vpop.f32.mrf.mxu0
    %v285 = vadd.f32 0.0, %v284
    %v286 = vpop.f32.mrf.mxu0
    %v287 = vadd.f32 0.0, %v286
    %v288 = vpop.f32.mrf.mxu0
    %v289 = vadd.f32 0.0, %v288
    %290 = vmatprep.mubr.bf16.mxu0 0
    %291 = vmatmul.mubr.bf16.gmra.mxu0 %v169
    %v292 = vpop.f32.mrf.mxu0
    %v293 = vadd.f32 0.0, %v292
    %v294 = vpop.f32.mrf.mxu0
    %v295 = vadd.f32 0.0, %v294
    %v296 = vpop.f32.mrf.mxu0
    %v297 = vadd.f32 0.0, %v296
    %v298 = vpop.f32.mrf.mxu0
    %v299 = vadd.f32 0.0, %v298
    %300 = vmatprep.mubr.bf16.mxu0 0
    %301 = vmatmul.mubr.bf16.gmra.mxu0 %v172
    %v302 = vpop.f32.mrf.mxu0
    %v303 = vadd.f32 0.0, %v302
    %v304 = vpop.f32.mrf.mxu0
    %v305 = vadd.f32 0.0, %v304
    %v306 = vpop.f32.mrf.mxu0
    %v307 = vadd.f32 0.0, %v306
    %v308 = vpop.f32.mrf.mxu0
    %v309 = vadd.f32 0.0, %v308
    %310 = vmatprep.mubr.bf16.mxu0 0
    %311 = vmatmul.mubr.bf16.gmra.mxu0 %v175
    %v312 = vpop.f32.mrf.mxu0
    %v313 = vadd.f32 0.0, %v312
    %v314 = vpop.f32.mrf.mxu0
    %v315 = vadd.f32 0.0, %v314
    %v316 = vpop.f32.mrf.mxu0
    %v317 = vadd.f32 0.0, %v316
    %v318 = vpop.f32.mrf.mxu0
    %v319 = vadd.f32 0.0, %v318
    %320 = vmatprep.mubr.bf16.mxu0 0
    %321 = vmatmul.mubr.bf16.gmra.mxu0 %v178
    %v322 = vpop.f32.mrf.mxu0
    %v323 = vadd.f32 0.0, %v322
    %v324 = vpop.f32.mrf.mxu0
    %v325 = vadd.f32 0.0, %v324
    %v326 = vpop.f32.mrf.mxu0
    %v327 = vadd.f32 0.0, %v326
    %v328 = vpop.f32.mrf.mxu0
    %v329 = vadd.f32 0.0, %v328
    %330 = vmatprep.mubr.bf16.mxu0 0
    %331 = vmatmul.mubr.bf16.gmra.mxu0 %v181
    %v332 = vpop.f32.mrf.mxu0
    %v333 = vadd.f32 0.0, %v332
    %v334 = vpop.f32.mrf.mxu0
    %v335 = vadd.f32 0.0, %v334
    %v336 = vpop.f32.mrf.mxu0
    %v337 = vadd.f32 0.0, %v336
    %v338 = vpop.f32.mrf.mxu0
    %v339 = vadd.f32 0.0, %v338
    %340 = vmatprep.mubr.bf16.mxu0 0
    %341 = vmatmul.mubr.bf16.gmra.mxu0 %v184
    %v342 = vpop.f32.mrf.mxu0
    %v343 = vadd.f32 0.0, %v342
    %v344 = vpop.f32.mrf.mxu0
    %v345 = vadd.f32 0.0, %v344
    %v346 = vpop.f32.mrf.mxu0
    %v347 = vadd.f32 0.0, %v346
    %v348 = vpop.f32.mrf.mxu0
    %v349 = vadd.f32 0.0, %v348
    %350 = vmatprep.mubr.bf16.mxu0 0
    %351 = vmatmul.mubr.bf16.gmra.mxu0 %v187
    %v352 = vpop.f32.mrf.mxu0
    %v353 = vadd.f32 0.0, %v352
    %v354 = vpop.f32.mrf.mxu0
    %v355 = vadd.f32 0.0, %v354
    %v356 = vpop.f32.mrf.mxu0
    %v357 = vadd.f32 0.0, %v356
    %v358 = vpop.f32.mrf.mxu0
    %v359 = vadd.f32 0.0, %v358
    %360 = vmatprep.mubr.bf16.mxu0 0
    %361 = vmatmul.mubr.bf16.gmra.mxu0 %v190
    %v362 = vpop.f32.mrf.mxu0
    %v363 = vadd.f32 0.0, %v362
    %v364 = vpop.f32.mrf.mxu0
    %v365 = vadd.f32 0.0, %v364
    %v366 = vpop.f32.mrf.mxu0
    %v367 = vadd.f32 0.0, %v366
    %v368 = vpop.f32.mrf.mxu0
    %v369 = vadd.f32 0.0, %v368
    %370 = vmatprep.mubr.bf16.mxu0 0
    %371 = vmatmul.mubr.bf16.gmra.mxu0 %v193
    %v372 = vpop.f32.mrf.mxu0
    %v373 = vadd.f32 0.0, %v372
    %v374 = vpop.f32.mrf.mxu0
    %v375 = vadd.f32 0.0, %v374
    %v376 = vpop.f32.mrf.mxu0
    %v377 = vadd.f32 0.0, %v376
    %v378 = vpop.f32.mrf.mxu0
    %v379 = vadd.f32 0.0, %v378
    %380 = vmatprep.mubr.bf16.mxu0 0
    %381 = vmatmul.mubr.bf16.gmra.mxu0 %v196
    %v382 = vpop.f32.mrf.mxu0
    %v383 = vadd.f32 0.0, %v382
    %v384 = vpop.f32.mrf.mxu0
    %v385 = vadd.f32 0.0, %v384
    %v386 = vpop.f32.mrf.mxu0
    %v387 = vadd.f32 0.0, %v386
    %v388 = vpop.f32.mrf.mxu0
    %v389 = vadd.f32 0.0, %v388
    %390 = vdwg.mxu0
    %v391 = vsub.f32 0.0, %v233
    %v392 = vsub.f32 0.0, %v235
    %v393 = vsub.f32 0.0, %v237
    %v394 = vsub.f32 0.0, %v239
    %v395 = vsub.f32 0.0, %v243
    %v396 = vsub.f32 0.0, %v245
    %v397 = vsub.f32 0.0, %v247
    %v398 = vsub.f32 0.0, %v249
    %v399 = vsub.f32 0.0, %v253
    %v400 = vsub.f32 0.0, %v255
    %v401 = vsub.f32 0.0, %v257
    %v402 = vsub.f32 0.0, %v259
    %v403 = vsub.f32 0.0, %v263
    %v404 = vsub.f32 0.0, %v265
    %v405 = vsub.f32 0.0, %v267
    %v406 = vsub.f32 0.0, %v269
    %v407 = vsub.f32 0.0, %v273
    %v408 = vsub.f32 0.0, %v275
    %v409 = vsub.f32 0.0, %v277
    %v410 = vsub.f32 0.0, %v279
    %v411 = vsub.f32 0.0, %v283
    %v412 = vsub.f32 0.0, %v285
    %v413 = vsub.f32 0.0, %v287
    %v414 = vsub.f32 0.0, %v289
    %v415 = vsub.f32 0.0, %v293
    %v416 = vsub.f32 0.0, %v295
    %v417 = vsub.f32 0.0, %v297
    %v418 = vsub.f32 0.0, %v299
    %v419 = vsub.f32 0.0, %v303
    %v420 = vsub.f32 0.0, %v305
    %v421 = vsub.f32 0.0, %v307
    %v422 = vsub.f32 0.0, %v309
    %v423 = vsub.f32 0.0, %v313
    %v424 = vsub.f32 0.0, %v315
    %v425 = vsub.f32 0.0, %v317
    %v426 = vsub.f32 0.0, %v319
    %v427 = vsub.f32 0.0, %v323
    %v428 = vsub.f32 0.0, %v325
    %v429 = vsub.f32 0.0, %v327
    %v430 = vsub.f32 0.0, %v329
    %v431 = vsub.f32 0.0, %v333
    %v432 = vsub.f32 0.0, %v335
    %v433 = vsub.f32 0.0, %v337
    %v434 = vsub.f32 0.0, %v339
    %v435 = vsub.f32 0.0, %v343
    %v436 = vsub.f32 0.0, %v345
    %v437 = vsub.f32 0.0, %v347
    %v438 = vsub.f32 0.0, %v349
    %v439 = vsub.f32 0.0, %v353
    %v440 = vsub.f32 0.0, %v355
    %v441 = vsub.f32 0.0, %v357
    %v442 = vsub.f32 0.0, %v359
    %v443 = vsub.f32 0.0, %v363
    %v444 = vsub.f32 0.0, %v365
    %v445 = vsub.f32 0.0, %v367
    %v446 = vsub.f32 0.0, %v369
    %v447 = vsub.f32 0.0, %v373
    %v448 = vsub.f32 0.0, %v375
    %v449 = vsub.f32 0.0, %v377
    %v450 = vsub.f32 0.0, %v379
    %v451 = vsub.f32 0.0, %v383
    %v452 = vsub.f32 0.0, %v385
    %v453 = vsub.f32 0.0, %v387
    %v454 = vsub.f32 0.0, %v389
    %v455 = vmul.f32 %v391, 1.442695
    %v456 = vpow.pop %v455
    %v457 = vmul.f32 %v392, 1.442695
    %v458 = vpow.pop %v457
    %v459 = vmul.f32 %v393, 1.442695
    %v460 = vpow.pop %v459
    %v461 = vmul.f32 %v394, 1.442695
    %v462 = vpow.pop %v461
    %v463 = vmul.f32 %v395, 1.442695
    %v464 = vpow.pop %v463
    %v465 = vmul.f32 %v396, 1.442695
    %v466 = vpow.pop %v465
    %v467 = vmul.f32 %v397, 1.442695
    %v468 = vpow.pop %v467
    %v469 = vmul.f32 %v398, 1.442695
    %v470 = vpow.pop %v469
    %v471 = vmul.f32 %v399, 1.442695
    %v472 = vpow.pop %v471
    %v473 = vmul.f32 %v400, 1.442695
    %v474 = vpow.pop %v473
    %v475 = vmul.f32 %v401, 1.442695
    %v476 = vpow.pop %v475
    %v477 = vmul.f32 %v402, 1.442695
    %v478 = vpow.pop %v477
    %v479 = vmul.f32 %v403, 1.442695
    %v480 = vpow.pop %v479
    %v481 = vmul.f32 %v404, 1.442695
    %v482 = vpow.pop %v481
    %v483 = vmul.f32 %v405, 1.442695
    %v484 = vpow.pop %v483
    %v485 = vmul.f32 %v406, 1.442695
    %v486 = vpow.pop %v485
    %v487 = vmul.f32 %v407, 1.442695
    %v488 = vpow.pop %v487
    %v489 = vmul.f32 %v408, 1.442695
    %v490 = vpow.pop %v489
    %v491 = vmul.f32 %v409, 1.442695
    %v492 = vpow.pop %v491
    %v493 = vmul.f32 %v410, 1.442695
    %v494 = vpow.pop %v493
    %v495 = vmul.f32 %v411, 1.442695
    %v496 = vpow.pop %v495
    %v497 = vmul.f32 %v412, 1.442695
    %v498 = vpow.pop %v497
    %v499 = vmul.f32 %v413, 1.442695
    %v500 = vpow.pop %v499
    %v501 = vmul.f32 %v414, 1.442695
    %v502 = vpow.pop %v501
    %v503 = vmul.f32 %v415, 1.442695
    %v504 = vpow.pop %v503
    %v505 = vmul.f32 %v416, 1.442695
    %v506 = vpow.pop %v505
    %v507 = vmul.f32 %v417, 1.442695
    %v508 = vpow.pop %v507
    %v509 = vmul.f32 %v418, 1.442695
    %v510 = vpow.pop %v509
    %v511 = vmul.f32 %v419, 1.442695
    %v512 = vpow.pop %v511
    %v513 = vmul.f32 %v420, 1.442695
    %v514 = vpow.pop %v513
    %v515 = vmul.f32 %v421, 1.442695
    %v516 = vpow.pop %v515
    %v517 = vmul.f32 %v422, 1.442695
    %v518 = vpow.pop %v517
    %v519 = vmul.f32 %v423, 1.442695
    %v520 = vpow.pop %v519
    %v521 = vmul.f32 %v424, 1.442695
    %v522 = vpow.pop %v521
    %v523 = vmul.f32 %v425, 1.442695
    %v524 = vpow.pop %v523
    %v525 = vmul.f32 %v426, 1.442695
    %v526 = vpow.pop %v525
    %v527 = vmul.f32 %v427, 1.442695
    %v528 = vpow.pop %v527
    %v529 = vmul.f32 %v428, 1.442695
    %v530 = vpow.pop %v529
    %v531 = vmul.f32 %v429, 1.442695
    %v532 = vpow.pop %v531
    %v533 = vmul.f32 %v430, 1.442695
    %v534 = vpow.pop %v533
    %v535 = vmul.f32 %v431, 1.442695
    %v536 = vpow.pop %v535
    %v537 = vmul.f32 %v432, 1.442695
    %v538 = vpow.pop %v537
    %v539 = vmul.f32 %v433, 1.442695
    %v540 = vpow.pop %v539
    %v541 = vmul.f32 %v434, 1.442695
    %v542 = vpow.pop %v541
    %v543 = vmul.f32 %v435, 1.442695
    %v544 = vpow.pop %v543
    %v545 = vmul.f32 %v436, 1.442695
    %v546 = vpow.pop %v545
    %v547 = vmul.f32 %v437, 1.442695
    %v548 = vpow.pop %v547
    %v549 = vmul.f32 %v438, 1.442695
    %v550 = vpow.pop %v549
    %v551 = vmul.f32 %v439, 1.442695
    %v552 = vpow.pop %v551
    %v553 = vmul.f32 %v440, 1.442695
    %v554 = vpow.pop %v553
    %v555 = vmul.f32 %v441, 1.442695
    %v556 = vpow.pop %v555
    %v557 = vmul.f32 %v442, 1.442695
    %v558 = vpow.pop %v557
    %v559 = vmul.f32 %v443, 1.442695
    %v560 = vpow.pop %v559
    %v561 = vmul.f32 %v444, 1.442695
    %v562 = vpow.pop %v561
    %v563 = vmul.f32 %v445, 1.442695
    %v564 = vpow.pop %v563
    %v565 = vmul.f32 %v446, 1.442695
    %v566 = vpow.pop %v565
    %v567 = vmul.f32 %v447, 1.442695
    %v568 = vpow.pop %v567
    %v569 = vmul.f32 %v448, 1.442695
    %v570 = vpow.pop %v569
    %v571 = vmul.f32 %v449, 1.442695
    %v572 = vpow.pop %v571
    %v573 = vmul.f32 %v450, 1.442695
    %v574 = vpow.pop %v573
    %v575 = vmul.f32 %v451, 1.442695
    %v576 = vpow.pop %v575
    %v577 = vmul.f32 %v452, 1.442695
    %v578 = vpow.pop %v577
    %v579 = vmul.f32 %v453, 1.442695
    %v580 = vpow.pop %v579
    %v581 = vmul.f32 %v454, 1.442695
    %v582 = vpow.pop %v581
    %v583 = vadd.f32 %v456, 1.0
    %v584 = vadd.f32 %v458, 1.0
    %v585 = vadd.f32 %v460, 1.0
    %v586 = vadd.f32 %v462, 1.0
    %v587 = vadd.f32 %v464, 1.0
    %v588 = vadd.f32 %v466, 1.0
    %v589 = vadd.f32 %v468, 1.0
    %v590 = vadd.f32 %v470, 1.0
    %v591 = vadd.f32 %v472, 1.0
    %v592 = vadd.f32 %v474, 1.0
    %v593 = vadd.f32 %v476, 1.0
    %v594 = vadd.f32 %v478, 1.0
    %v595 = vadd.f32 %v480, 1.0
    %v596 = vadd.f32 %v482, 1.0
    %v597 = vadd.f32 %v484, 1.0
    %v598 = vadd.f32 %v486, 1.0
    %v599 = vadd.f32 %v488, 1.0
    %v600 = vadd.f32 %v490, 1.0
    %v601 = vadd.f32 %v492, 1.0
    %v602 = vadd.f32 %v494, 1.0
    %v603 = vadd.f32 %v496, 1.0
    %v604 = vadd.f32 %v498, 1.0
    %v605 = vadd.f32 %v500, 1.0
    %v606 = vadd.f32 %v502, 1.0
    %v607 = vadd.f32 %v504, 1.0
    %v608 = vadd.f32 %v506, 1.0
    %v609 = vadd.f32 %v508, 1.0
    %v610 = vadd.f32 %v510, 1.0
    %v611 = vadd.f32 %v512, 1.0
    %v612 = vadd.f32 %v514, 1.0
    %v613 = vadd.f32 %v516, 1.0
    %v614 = vadd.f32 %v518, 1.0
    %v615 = vadd.f32 %v520, 1.0
    %v616 = vadd.f32 %v522, 1.0
    %v617 = vadd.f32 %v524, 1.0
    %v618 = vadd.f32 %v526, 1.0
    %v619 = vadd.f32 %v528, 1.0
    %v620 = vadd.f32 %v530, 1.0
    %v621 = vadd.f32 %v532, 1.0
    %v622 = vadd.f32 %v534, 1.0
    %v623 = vadd.f32 %v536, 1.0
    %v624 = vadd.f32 %v538, 1.0
    %v625 = vadd.f32 %v540, 1.0
    %v626 = vadd.f32 %v542, 1.0
    %v627 = vadd.f32 %v544, 1.0
    %v628 = vadd.f32 %v546, 1.0
    %v629 = vadd.f32 %v548, 1.0
    %v630 = vadd.f32 %v550, 1.0
    %v631 = vadd.f32 %v552, 1.0
    %v632 = vadd.f32 %v554, 1.0
    %v633 = vadd.f32 %v556, 1.0
    %v634 = vadd.f32 %v558, 1.0
    %v635 = vadd.f32 %v560, 1.0
    %v636 = vadd.f32 %v562, 1.0
    %v637 = vadd.f32 %v564, 1.0
    %v638 = vadd.f32 %v566, 1.0
    %v639 = vadd.f32 %v568, 1.0
    %v640 = vadd.f32 %v570, 1.0
    %v641 = vadd.f32 %v572, 1.0
    %v642 = vadd.f32 %v574, 1.0
    %v643 = vadd.f32 %v576, 1.0
    %v644 = vadd.f32 %v578, 1.0
    %v645 = vadd.f32 %v580, 1.0
    %v646 = vadd.f32 %v582, 1.0
    %v647 = vrcp.pop %v583
    %v648 = vrcp.pop %v584
    %v649 = vrcp.pop %v585
    %v650 = vrcp.pop %v586
    %v651 = vrcp.pop %v587
    %v652 = vrcp.pop %v588
    %v653 = vrcp.pop %v589
    %v654 = vrcp.pop %v590
    %v655 = vrcp.pop %v591
    %v656 = vrcp.pop %v592
    %v657 = vrcp.pop %v593
    %v658 = vrcp.pop %v594
    %v659 = vrcp.pop %v595
    %v660 = vrcp.pop %v596
    %v661 = vrcp.pop %v597
    %v662 = vrcp.pop %v598
    %v663 = vrcp.pop %v599
    %v664 = vrcp.pop %v600
    %v665 = vrcp.pop %v601
    %v666 = vrcp.pop %v602
    %v667 = vrcp.pop %v603
    %v668 = vrcp.pop %v604
    %v669 = vrcp.pop %v605
    %v670 = vrcp.pop %v606
    %v671 = vrcp.pop %v607
    %v672 = vrcp.pop %v608
    %v673 = vrcp.pop %v609
    %v674 = vrcp.pop %v610
    %v675 = vrcp.pop %v611
    %v676 = vrcp.pop %v612
    %v677 = vrcp.pop %v613
    %v678 = vrcp.pop %v614
    %v679 = vrcp.pop %v615
    %v680 = vrcp.pop %v616
    %v681 = vrcp.pop %v617
    %v682 = vrcp.pop %v618
    %v683 = vrcp.pop %v619
    %v684 = vrcp.pop %v620
    %v685 = vrcp.pop %v621
    %v686 = vrcp.pop %v622
    %v687 = vrcp.pop %v623
    %v688 = vrcp.pop %v624
    %v689 = vrcp.pop %v625
    %v690 = vrcp.pop %v626
    %v691 = vrcp.pop %v627
    %v692 = vrcp.pop %v628
    %v693 = vrcp.pop %v629
    %v694 = vrcp.pop %v630
    %v695 = vrcp.pop %v631
    %v696 = vrcp.pop %v632
    %v697 = vrcp.pop %v633
    %v698 = vrcp.pop %v634
    %v699 = vrcp.pop %v635
    %v700 = vrcp.pop %v636
    %v701 = vrcp.pop %v637
    %v702 = vrcp.pop %v638
    %v703 = vrcp.pop %v639
    %v704 = vrcp.pop %v640
    %v705 = vrcp.pop %v641
    %v706 = vrcp.pop %v642
    %v707 = vrcp.pop %v643
    %v708 = vrcp.pop %v644
    %v709 = vrcp.pop %v645
    %v710 = vrcp.pop %v646
    %711 = vst [vmem:[#allocation2] sm:$0xff] %v647
    %712 = vst [vmem:[#allocation2 + $0x8] sm:$0xff] %v648
    %713 = vst [vmem:[#allocation2 + $0x10] sm:$0xff] %v649
    %714 = vst [vmem:[#allocation2 + $0x18] sm:$0xff] %v650
    %715 = vst [vmem:[#allocation2 + $0x20] sm:$0xff] %v651
    %716 = vst [vmem:[#allocation2 + $0x28] sm:$0xff] %v652
    %717 = vst [vmem:[#allocation2 + $0x30] sm:$0xff] %v653
    %718 = vst [vmem:[#allocation2 + $0x38] sm:$0xff] %v654
    %719 = vst [vmem:[#allocation2 + $0x40] sm:$0xff] %v655
    %720 = vst [vmem:[#allocation2 + $0x48] sm:$0xff] %v656
    %721 = vst [vmem:[#allocation2 + $0x50] sm:$0xff] %v657
    %722 = vst [vmem:[#allocation2 + $0x58] sm:$0xff] %v658
    %723 = vst [vmem:[#allocation2 + $0x60] sm:$0xff] %v659
    %724 = vst [vmem:[#allocation2 + $0x68] sm:$0xff] %v660
    %725 = vst [vmem:[#allocation2 + $0x70] sm:$0xff] %v661
    %726 = vst [vmem:[#allocation2 + $0x78] sm:$0xff] %v662
    %727 = vst [vmem:[#allocation2 + $0x80] sm:$0xff] %v663
    %728 = vst [vmem:[#allocation2 + $0x88] sm:$0xff] %v664
    %729 = vst [vmem:[#allocation2 + $0x90] sm:$0xff] %v665
    %730 = vst [vmem:[#allocation2 + $0x98] sm:$0xff] %v666
    %731 = vst [vmem:[#allocation2 + $0xa0] sm:$0xff] %v667
    %732 = vst [vmem:[#allocation2 + $0xa8] sm:$0xff] %v668
    %733 = vst [vmem:[#allocation2 + $0xb0] sm:$0xff] %v669
    %734 = vst [vmem:[#allocation2 + $0xb8] sm:$0xff] %v670
    %735 = vst [vmem:[#allocation2 + $0xc0] sm:$0xff] %v671
    %736 = vst [vmem:[#allocation2 + $0xc8] sm:$0xff] %v672
    %737 = vst [vmem:[#allocation2 + $0xd0] sm:$0xff] %v673
    %738 = vst [vmem:[#allocation2 + $0xd8] sm:$0xff] %v674
    %739 = vst [vmem:[#allocation2 + $0xe0] sm:$0xff] %v675
    %740 = vst [vmem:[#allocation2 + $0xe8] sm:$0xff] %v676
    %741 = vst [vmem:[#allocation2 + $0xf0] sm:$0xff] %v677
    %742 = vst [vmem:[#allocation2 + $0xf8] sm:$0xff] %v678
    %743 = vst [vmem:[#allocation2 + $0x100] sm:$0xff] %v679
    %744 = vst [vmem:[#allocation2 + $0x108] sm:$0xff] %v680
    %745 = vst [vmem:[#allocation2 + $0x110] sm:$0xff] %v681
    %746 = vst [vmem:[#allocation2 + $0x118] sm:$0xff] %v682
    %747 = vst [vmem:[#allocation2 + $0x120] sm:$0xff] %v683
    %748 = vst [vmem:[#allocation2 + $0x128] sm:$0xff] %v684
    %749 = vst [vmem:[#allocation2 + $0x130] sm:$0xff] %v685
    %750 = vst [vmem:[#allocation2 + $0x138] sm:$0xff] %v686
    %751 = vst [vmem:[#allocation2 + $0x140] sm:$0xff] %v687
    %752 = vst [vmem:[#allocation2 + $0x148] sm:$0xff] %v688
    %753 = vst [vmem:[#allocation2 + $0x150] sm:$0xff] %v689
    %754 = vst [vmem:[#allocation2 + $0x158] sm:$0xff] %v690
    %755 = vst [vmem:[#allocation2 + $0x160] sm:$0xff] %v691
    %756 = vst [vmem:[#allocation2 + $0x168] sm:$0xff] %v692
    %757 = vst [vmem:[#allocation2 + $0x170] sm:$0xff] %v693
    %758 = vst [vmem:[#allocation2 + $0x178] sm:$0xff] %v694
    %759 = vst [vmem:[#allocation2 + $0x180] sm:$0xff] %v695
    %760 = vst [vmem:[#allocation2 + $0x188] sm:$0xff] %v696
    %761 = vst [vmem:[#allocation2 + $0x190] sm:$0xff] %v697
    %762 = vst [vmem:[#allocation2 + $0x198] sm:$0xff] %v698
    %763 = vst [vmem:[#allocation2 + $0x1a0] sm:$0xff] %v699
    %764 = vst [vmem:[#allocation2 + $0x1a8] sm:$0xff] %v700
    %765 = vst [vmem:[#allocation2 + $0x1b0] sm:$0xff] %v701
    %766 = vst [vmem:[#allocation2 + $0x1b8] sm:$0xff] %v702
    %767 = vst [vmem:[#allocation2 + $0x1c0] sm:$0xff] %v703
    %768 = vst [vmem:[#allocation2 + $0x1c8] sm:$0xff] %v704
    %769 = vst [vmem:[#allocation2 + $0x1d0] sm:$0xff] %v705
    %770 = vst [vmem:[#allocation2 + $0x1d8] sm:$0xff] %v706
    %771 = vst [vmem:[#allocation2 + $0x1e0] sm:$0xff] %v707
    %772 = vst [vmem:[#allocation2 + $0x1e8] sm:$0xff] %v708
    %773 = vst [vmem:[#allocation2 + $0x1f0] sm:$0xff] %v709
    %774 = vst [vmem:[#allocation2 + $0x1f8] sm:$0xff] %v710
    // Predicated region
    $region10: #{tpu_custom_call.1} parent=1 // pred_check
      _
    $region11: #{tpu_custom_call.1} parent=1 // pred_check_branch
      %776 = sbr.rel (0) target = $region13
    $region12: #{tpu_custom_call.1} parent=1 // pred_region
      %s778 = ssub.s32 8192, 8192
      %779 = vsyncadd [#allocation3], %s778
      %s780 = sshll.u32 [#allocation2], 4
      %s781 = int_to_ptr.vmem [resolvable:$true] %s780
      %786 = dma.vmem_to_hbm [thread:$0]  %s781, 8192, %s2, [#allocation3], 256, 256, 16
    $region13: #{tpu_custom_call.1} parent=1 // pred_fallthru
      _
    // Predicated region
    $region14: #{tpu_custom_call.1} parent=1 // pred_check
      _
    $region15: #{tpu_custom_call.1} parent=1 // pred_check_branch
      %788 = sbr.rel (0) target = $region17
    $region16: #{tpu_custom_call.1} parent=1 // pred_region
      %789 = dma.done [#allocation3], 8192
    $region17: #{tpu_custom_call.1} parent=1 // pred_fallthru
      _
    %790 = vsyncpa [#allocation3], 1

</llo_original>
